<compile_context>
chip_gen: v7x
topology: tpu7x:2x2x1
jax: 0.10.0
libtpu: 0.0.40
codegen_flags: <defaults>
</compile_context>

<pallas_src>
import functools

import jax
import jax.numpy as jnp
from jax.experimental import pallas as pl
from jax.experimental.pallas import tpu as pltpu


def _gcn_kernel(adj_ref, x_ref, w_ref, b_ref, o_ref, *, tb, nodes):
    """One batch chunk: o = adj @ (x @ W^T) + bias.

    adj_ref: (J, J)           f32, resident
    x_ref:   (tb*J, Fin_p)    dot_dtype, streamed per chunk
    w_ref:   (Fin_p, Fout_p)  dot_dtype, resident (pre-transposed nn.Linear weight)
    b_ref:   (1, Fout_p)      f32, resident
    o_ref:   (tb*J, Fout_p)   f32, streamed per chunk
    """
    # The one big dense MXU matmul: batch*nodes rows folded into M, f32 accumulation.
    h = jnp.dot(x_ref[...], w_ref[...], preferred_element_type=jnp.float32)
    adj = adj_ref[...]
    bias = b_ref[...]
    # Tiny (J, J) x (J, Fout) adjacency matmuls, one per batch element in the
    # chunk; kept fully in f32 (exact useful MACs, no kron zero-padding).
    for b in range(tb):
        hb = h[b * nodes:(b + 1) * nodes, :]
        ob = jnp.dot(adj, hb, preferred_element_type=jnp.float32) + bias
        o_ref[b * nodes:(b + 1) * nodes, :] = ob.astype(o_ref.dtype)


def _round_up(v, m):
    return ((v + m - 1) // m) * m


def gcn_layer(x, adj, weight, bias, *, batch_block=None, dot_dtype=jnp.bfloat16):
    """GCNLayer forward: linear(adj @ x).

    x:      (B, J, Fin) float32
    adj:    (J, J)      float32
    weight: (Fout, Fin) float32   (nn.Linear convention)
    bias:   (Fout,)     float32
    returns (B, J, Fout) float32
    """
    B, J, Fin = x.shape
    Fout = weight.shape[0]

    # ---- chunking over the batch -------------------------------------------
    if batch_block is None:
        # Target ~256 rows (= tb*J) per grid step; cap the per-chunk unroll.
        tb = max(1, min(B, max(1, 256 // max(J, 1)), 32))
    else:
        tb = max(1, min(int(batch_block), B))
    # BlockSpec sublane constraint: when chunking, tb*J must be a multiple of 8.
    while tb < B and (tb * J) % 8 != 0:
        tb += 1
    Bp = _round_up(B, tb)          # pad ragged batches instead of going resident
    rows = tb * J
    num_chunks = Bp // tb

    # ---- lane-dense padding of the feature dims ----------------------------
    Fin_p = _round_up(Fin, 128)
    Fout_p = _round_up(Fout, 128)

    # ---- host-side (one-time XLA) layout prep -------------------------------
    x_flat = x.reshape(B * J, Fin).astype(dot_dtype)
    if Bp != B or Fin_p != Fin:
        x_flat = jnp.pad(x_flat, ((0, (Bp - B) * J), (0, Fin_p - Fin)))
    w_t = weight.T.astype(dot_dtype)                       # (Fin, Fout), no in-kernel .T
    if Fin_p != Fin or Fout_p != Fout:
        w_t = jnp.pad(w_t, ((0, Fin_p - Fin), (0, Fout_p - Fout)))
    b2 = bias.astype(jnp.float32).reshape(1, Fout)
    if Fout_p != Fout:
        b2 = jnp.pad(b2, ((0, 0), (0, Fout_p - Fout)))
    adj_f32 = adj.astype(jnp.float32)

    # ---- explicit VMEM budget (streamed operands are double-buffered) -------
    db = jnp.dtype(dot_dtype).itemsize
    est = (2 * rows * Fin_p * db          # x chunk (double-buffered)
           + 2 * rows * Fout_p * 4        # out chunk (double-buffered, f32)
           + 2 * Fin_p * Fout_p * db      # resident W^T
           + 2 * (J * J + Fout_p) * 4     # adj + bias
           + 2 * rows * Fout_p * 4)       # f32 intermediate h / spills
    vmem_limit = int(min(max(4 * est, 16 * 2**20), 64 * 2**20))

    kernel = functools.partial(_gcn_kernel, tb=tb, nodes=J)

    out_flat = pl.pallas_call(
        kernel,
        out_shape=jax.ShapeDtypeStruct((Bp * J, Fout_p), jnp.float32),
        grid_spec=pltpu.PrefetchScalarGridSpec(
            num_scalar_prefetch=0,
            grid=(num_chunks,),
            in_specs=[
                pl.BlockSpec((J, J), lambda c: (0, 0)),            # adj (resident)
                pl.BlockSpec((rows, Fin_p), lambda c: (c, 0)),     # x chunk (streamed)
                pl.BlockSpec((Fin_p, Fout_p), lambda c: (0, 0)),   # W^T (resident)
                pl.BlockSpec((1, Fout_p), lambda c: (0, 0)),       # bias (resident)
            ],
            out_specs=pl.BlockSpec((rows, Fout_p), lambda c: (c, 0)),  # lane-dense slab
        ),
        compiler_params=pltpu.CompilerParams(
            dimension_semantics=("parallel",),                     # v7x megacore over chunks
            vmem_limit_bytes=vmem_limit),
    )(adj_f32, x_flat, w_t, b2)

    return out_flat[: B * J, :Fout].reshape(B, J, Fout)


def _reference(x, adj, weight, bias):
    """Pure-JAX reference of GCNLayer.forward (full f32 precision)."""
    with jax.default_matmul_precision("highest"):
        h = jnp.einsum("ij,bjf->bif", adj, x)
        return h @ weight.T + bias


if __name__ == "__main__":
    key = jax.random.PRNGKey(0)
    kx, ka, kw, kb = jax.random.split(key, 4)

    # Small shapes consistent with the module: 4 batches, 16 graph nodes,
    # 64 -> 128 features.  (Perf tuning should use much larger B*J.)
    B, J, Fin, Fout = 4, 16, 64, 128

    x = jax.random.normal(kx, (B, J, Fin), jnp.float32)

    # Symmetric row-normalized adjacency (skeleton-graph surrogate).
    a = jax.random.uniform(ka, (J, J), jnp.float32)
    a = (a + a.T) * 0.5 + jnp.eye(J, dtype=jnp.float32)
    adj = a / jnp.sum(a, axis=-1, keepdims=True)

    # nn.Linear-style parameters.
    scale = 1.0 / jnp.sqrt(Fin)
    weight = jax.random.uniform(kw, (Fout, Fin), jnp.float32, -scale, scale)
    bias = jax.random.uniform(kb, (Fout,), jnp.float32, -scale, scale)

    ref = _reference(x, adj, weight, bias)

    # Default path: bf16 MXU operands for the linear, f32 accumulation,
    # f32 adjacency + bias.
    out_bf16 = jax.block_until_ready(gcn_layer(x, adj, weight, bias))
    assert out_bf16.shape == (B, J, Fout)
    assert jnp.allclose(out_bf16, ref, atol=5e-2, rtol=5e-2), "bf16 mismatch vs reference"

    # Full-f32 path (near-exact).
    out_f32 = jax.block_until_ready(
        gcn_layer(x, adj, weight, bias, dot_dtype=jnp.float32))
    assert jnp.allclose(out_f32, ref, atol=1e-4, rtol=1e-4), "f32 mismatch vs reference"

    print("KERNEL_OK")
</pallas_src>

<mosaic_0001>
module attributes {stable_mosaic.version = 11 : i64} {
  func.func @_gcn_kernel(%arg0: i32, %arg1: memref<16x16xf32, #tpu.memory_space<vmem>>, %arg2: memref<64x128xbf16, #tpu.memory_space<vmem>>, %arg3: memref<128x128xbf16, #tpu.memory_space<vmem>>, %arg4: memref<1x128xf32, #tpu.memory_space<vmem>>, %arg5: memref<64x128xf32, #tpu.memory_space<vmem>>) attributes {dimension_semantics = [#tpu.dimension_semantics<parallel>], iteration_bounds = array<i64: 1>, scalar_prefetch = 0 : i64, scratch_operands = 0 : i64, tpu.core_type = #tpu.core_type<tc>, window_params = [{pipeline_mode = #tpu.pipeline_mode<synchronous>, transform_indices = @transform_0, window_bounds = array<i64: 16, 16>}, {transform_indices = @transform_1, window_bounds = array<i64: 64, 128>}, {pipeline_mode = #tpu.pipeline_mode<synchronous>, transform_indices = @transform_2, window_bounds = array<i64: 128, 128>}, {pipeline_mode = #tpu.pipeline_mode<synchronous>, transform_indices = @transform_3, window_bounds = array<i64: 1, 128>}, {transform_indices = @transform_4, window_bounds = array<i64: 64, 128>}]} {
    %c0 = arith.constant 0 : index
    %c0_0 = arith.constant 0 : index
    %0 = vector.load %arg2[%c0, %c0_0] : memref<64x128xbf16, #tpu.memory_space<vmem>>, vector<64x128xbf16>
    %c0_1 = arith.constant 0 : index
    %c0_2 = arith.constant 0 : index
    %1 = vector.load %arg3[%c0_1, %c0_2] : memref<128x128xbf16, #tpu.memory_space<vmem>>, vector<128x128xbf16>
    %cst = arith.constant dense<0.000000e+00> : vector<64x128xf32>
    %2 = tpu.matmul %0, %1, %cst {dimension_numbers = #tpu.dot_dimension_numbers<[1], [0], [0], [1], [0, 0, 1, 1], [], []>} : vector<64x128xbf16>, vector<128x128xbf16>, vector<64x128xf32> -> vector<64x128xf32>
    %c0_3 = arith.constant 0 : index
    %c0_4 = arith.constant 0 : index
    %3 = vector.load %arg1[%c0_3, %c0_4] : memref<16x16xf32, #tpu.memory_space<vmem>>, vector<16x16xf32>
    %c0_5 = arith.constant 0 : index
    %c0_6 = arith.constant 0 : index
    %4 = vector.load %arg4[%c0_5, %c0_6] : memref<1x128xf32, #tpu.memory_space<vmem>>, vector<1x128xf32>
    %5 = vector.extract_strided_slice %2 {offsets = [0, 0], sizes = [16, 128], strides = [1, 1]} : vector<64x128xf32> to vector<16x128xf32>
    %cst_7 = arith.constant dense<0.000000e+00> : vector<16x128xf32>
    %6 = tpu.matmul %3, %5, %cst_7 {dimension_numbers = #tpu.dot_dimension_numbers<[1], [0], [0], [1], [0, 0, 1, 1], [], []>} : vector<16x16xf32>, vector<16x128xf32>, vector<16x128xf32> -> vector<16x128xf32>
    %7 = vector.broadcast %4 : vector<1x128xf32> to vector<16x128xf32>
    %8 = arith.addf %6, %7 : vector<16x128xf32>
    %c0_8 = arith.constant 0 : index
    %c0_9 = arith.constant 0 : index
    %9 = vector.load %arg5[%c0_8, %c0_9] : memref<64x128xf32, #tpu.memory_space<vmem>>, vector<16x128xf32>
    tpu.vector_store %arg5[%c0_8, %c0_9], %8 {strides = array<i32>} : memref<64x128xf32, #tpu.memory_space<vmem>>, vector<16x128xf32>,
    %10 = vector.extract_strided_slice %2 {offsets = [16, 0], sizes = [16, 128], strides = [1, 1]} : vector<64x128xf32> to vector<16x128xf32>
    %cst_10 = arith.constant dense<0.000000e+00> : vector<16x128xf32>
    %11 = tpu.matmul %3, %10, %cst_10 {dimension_numbers = #tpu.dot_dimension_numbers<[1], [0], [0], [1], [0, 0, 1, 1], [], []>} : vector<16x16xf32>, vector<16x128xf32>, vector<16x128xf32> -> vector<16x128xf32>
    %12 = vector.broadcast %4 : vector<1x128xf32> to vector<16x128xf32>
    %13 = arith.addf %11, %12 : vector<16x128xf32>
    %c16 = arith.constant 16 : index
    %c0_11 = arith.constant 0 : index
    %14 = vector.load %arg5[%c16, %c0_11] : memref<64x128xf32, #tpu.memory_space<vmem>>, vector<16x128xf32>
    tpu.vector_store %arg5[%c16, %c0_11], %13 {strides = array<i32>} : memref<64x128xf32, #tpu.memory_space<vmem>>, vector<16x128xf32>,
    %15 = vector.extract_strided_slice %2 {offsets = [32, 0], sizes = [16, 128], strides = [1, 1]} : vector<64x128xf32> to vector<16x128xf32>
    %cst_12 = arith.constant dense<0.000000e+00> : vector<16x128xf32>
    %16 = tpu.matmul %3, %15, %cst_12 {dimension_numbers = #tpu.dot_dimension_numbers<[1], [0], [0], [1], [0, 0, 1, 1], [], []>} : vector<16x16xf32>, vector<16x128xf32>, vector<16x128xf32> -> vector<16x128xf32>
    %17 = vector.broadcast %4 : vector<1x128xf32> to vector<16x128xf32>
    %18 = arith.addf %16, %17 : vector<16x128xf32>
    %c32 = arith.constant 32 : index
    %c0_13 = arith.constant 0 : index
    %19 = vector.load %arg5[%c32, %c0_13] : memref<64x128xf32, #tpu.memory_space<vmem>>, vector<16x128xf32>
    tpu.vector_store %arg5[%c32, %c0_13], %18 {strides = array<i32>} : memref<64x128xf32, #tpu.memory_space<vmem>>, vector<16x128xf32>,
    %20 = vector.extract_strided_slice %2 {offsets = [48, 0], sizes = [16, 128], strides = [1, 1]} : vector<64x128xf32> to vector<16x128xf32>
    %cst_14 = arith.constant dense<0.000000e+00> : vector<16x128xf32>
    %21 = tpu.matmul %3, %20, %cst_14 {dimension_numbers = #tpu.dot_dimension_numbers<[1], [0], [0], [1], [0, 0, 1, 1], [], []>} : vector<16x16xf32>, vector<16x128xf32>, vector<16x128xf32> -> vector<16x128xf32>
    %22 = vector.broadcast %4 : vector<1x128xf32> to vector<16x128xf32>
    %23 = arith.addf %21, %22 : vector<16x128xf32>
    %c48 = arith.constant 48 : index
    %c0_15 = arith.constant 0 : index
    %24 = vector.load %arg5[%c48, %c0_15] : memref<64x128xf32, #tpu.memory_space<vmem>>, vector<16x128xf32>
    tpu.vector_store %arg5[%c48, %c0_15], %23 {strides = array<i32>} : memref<64x128xf32, #tpu.memory_space<vmem>>, vector<16x128xf32>,
    return
  }
  func.func @transform_0(%arg0: i32) -> (i32, i32) {
    %c0_i32 = arith.constant 0 : i32
    %c0_i32_0 = arith.constant 0 : i32
    %c0_i32_1 = arith.constant 0 : i32
    return %c0_i32, %c0_i32_0 : i32, i32
  }
  func.func @transform_1(%arg0: i32) -> (i32, i32) {
    %c0_i32 = arith.constant 0 : i32
    %c0_i32_0 = arith.constant 0 : i32
    return %arg0, %c0_i32 : i32, i32
  }
  func.func @transform_2(%arg0: i32) -> (i32, i32) {
    %c0_i32 = arith.constant 0 : i32
    %c0_i32_0 = arith.constant 0 : i32
    %c0_i32_1 = arith.constant 0 : i32
    return %c0_i32, %c0_i32_0 : i32, i32
  }
  func.func @transform_3(%arg0: i32) -> (i32, i32) {
    %c0_i32 = arith.constant 0 : i32
    %c0_i32_0 = arith.constant 0 : i32
    %c0_i32_1 = arith.constant 0 : i32
    return %c0_i32, %c0_i32_0 : i32, i32
  }
  func.func @transform_4(%arg0: i32) -> (i32, i32) {
    %c0_i32 = arith.constant 0 : i32
    %c0_i32_0 = arith.constant 0 : i32
    return %arg0, %c0_i32 : i32, i32
  }
}

</mosaic_0001>

<llo_original>
// kernel: tpu_custom_call.1
$region0: #{tpu_custom_call.1}
  #allocation0 [shape = 'u32[]', space=smem, size = 0x4, offset = 0x4, fixed_abs, tag = 'smem constant byte address 0x4 - core index']
  #allocation1 [shape = 'u32[144,128]{1,0:T(1,128)}', space=vmem, size = 0x12000, scoped, tag = 'internal scratch']
  %s0 = inlined_call_operand.hbm [shape: f32[16,16], index: 0, kind: input, shape index: {}]
  %s1 = inlined_call_operand.hbm [shape: bf16[64,128], index: 1, kind: input, shape index: {}]
  %s2 = inlined_call_operand.hbm [shape: bf16[128,128], index: 2, kind: input, shape index: {}]
  %s3 = inlined_call_operand.vmem [shape: f32[1,128], index: 3, kind: input, shape index: {}]
  %s4 = inlined_call_operand.hbm [shape: f32[64,128], index: 4, kind: output, shape index: {}]
  %s5 = sld [smem:[#allocation0]]
  $region38: #{tpu_custom_call.1} parent=0
    _
  %s7 = ssub.s32 1, %s5
  %s8 = scalar_select 0, %s7, %s5
  $region1: #{tpu_custom_call.1} parent=0
    #allocation2 [shape = 'u8[8192]{0}', space=vmem, size = 0x2000, scoped, tag = 'input window, operand 0, single buffered']
    #allocation3 [shape = 's32[1]{0}', space=sflag, size = 0x4, scoped, tag = 'scoped memory for tpu_custom_call.1']
    #allocation4 [shape = 's32[1]{0}', space=sflag, size = 0x4, scoped, tag = 'scoped memory for tpu_custom_call.1']
    #allocation5 [shape = 'u8[16384]{0}', space=vmem, size = 0x4000, scoped, tag = 'input window, operand 1, single buffered']
    #allocation6 [shape = 's32[1]{0}', space=sflag, size = 0x4, scoped, tag = 'scoped memory for tpu_custom_call.1']
    #allocation7 [shape = 'u8[32768]{0}', space=vmem, size = 0x8000, scoped, tag = 'input window, operand 2, single buffered']
    #allocation8 [shape = 'u8[32768]{0}', space=vmem, size = 0x8000, scoped, tag = 'output window, operand 0, single buffered']
    %9 = vsyncpa [#allocation3], 0
    %10 = vsyncpa [#allocation6], 0
    %11 = vsyncpa [#allocation4], 0
    // Predicated region
    $region2: #{tpu_custom_call.1} parent=1 // pred_check
      _
    $region3: #{tpu_custom_call.1} parent=1 // pred_check_branch
      %13 = sbr.rel (0) target = $region5
    $region4: #{tpu_custom_call.1} parent=1 // pred_region
      %s15 = ssub.s32 256, 256
      %16 = vsyncadd [#allocation3], %s15
      %s17 = sshll.u32 [#allocation2], 4
      %s18 = int_to_ptr.vmem [resolvable:$true] %s17
      %23 = dma.hbm_to_vmem [thread:$0]  %s0, 256, %s18, [#allocation3], 128, 128, 8
    $region5: #{tpu_custom_call.1} parent=1 // pred_fallthru
      _
    // Predicated region
    $region6: #{tpu_custom_call.1} parent=1 // pred_check
      _
    $region7: #{tpu_custom_call.1} parent=1 // pred_check_branch
      %25 = sbr.rel (0) target = $region9
    $region8: #{tpu_custom_call.1} parent=1 // pred_region
      %s27 = ssub.s32 512, 512
      %28 = vsyncadd [#allocation6], %s27
      %s29 = sshll.u32 [#allocation5], 4
      %s30 = int_to_ptr.vmem [resolvable:$true] %s29
      %35 = dma.hbm_to_vmem [thread:$0]  %s1, 512, %s30, [#allocation6], 64, 64, 4
    $region9: #{tpu_custom_call.1} parent=1 // pred_fallthru
      _
    // Predicated region
    $region10: #{tpu_custom_call.1} parent=1 // pred_check
      _
    $region11: #{tpu_custom_call.1} parent=1 // pred_check_branch
      %37 = sbr.rel (0) target = $region13
    $region12: #{tpu_custom_call.1} parent=1 // pred_region
      %s39 = ssub.s32 1024, 1024
      %40 = vsyncadd [#allocation6], %s39
      %s41 = sshll.u32 [#allocation7], 4
      %s42 = int_to_ptr.vmem [resolvable:$true] %s41
      %47 = dma.hbm_to_vmem [thread:$0]  %s2, 1024, %s42, [#allocation6], 64, 64, 4
    $region13: #{tpu_custom_call.1} parent=1 // pred_fallthru
      _
    // Predicated region
    $region14: #{tpu_custom_call.1} parent=1 // pred_check
      _
    $region15: #{tpu_custom_call.1} parent=1 // pred_check_branch
      %49 = sbr.rel (0) target = $region17
    $region16: #{tpu_custom_call.1} parent=1 // pred_region
      _
    $region17: #{tpu_custom_call.1} parent=1 // pred_fallthru
      _
    // Predicated region
    $region18: #{tpu_custom_call.1} parent=1 // pred_check
      _
    $region19: #{tpu_custom_call.1} parent=1 // pred_check_branch
      %51 = sbr.rel (0) target = $region21
    $region20: #{tpu_custom_call.1} parent=1 // pred_region
      %52 = dma.done [#allocation3], 256
    $region21: #{tpu_custom_call.1} parent=1 // pred_fallthru
      _
    // Predicated region
    $region22: #{tpu_custom_call.1} parent=1 // pred_check
      _
    $region23: #{tpu_custom_call.1} parent=1 // pred_check_branch
      %54 = sbr.rel (0) target = $region25
    $region24: #{tpu_custom_call.1} parent=1 // pred_region
      %55 = dma.done [#allocation6], 512
    $region25: #{tpu_custom_call.1} parent=1 // pred_fallthru
      _
    // Predicated region
    $region26: #{tpu_custom_call.1} parent=1 // pred_check
      _
    $region27: #{tpu_custom_call.1} parent=1 // pred_check_branch
      %57 = sbr.rel (0) target = $region29
    $region28: #{tpu_custom_call.1} parent=1 // pred_region
      %58 = dma.done [#allocation6], 1024
    $region29: #{tpu_custom_call.1} parent=1 // pred_fallthru
      _
    %v60 = vld [vmem:[#allocation5] sm:$0xf]
    %v61 = vld [vmem:[#allocation5 + $0x4] sm:$0xf]
    %v62 = vld [vmem:[#allocation5 + $0x8] sm:$0xf]
    %v63 = vld [vmem:[#allocation5 + $0xc] sm:$0xf]
    %v64 = vld [vmem:[#allocation5 + $0x10] sm:$0xf]
    %v65 = vld [vmem:[#allocation5 + $0x14] sm:$0xf]
    %v66 = vld [vmem:[#allocation5 + $0x18] sm:$0xf]
    %v67 = vld [vmem:[#allocation5 + $0x1c] sm:$0xf]
    %v68 = vld [vmem:[#allocation7] sm:$0xf]
    %v69 = vld [vmem:[#allocation7 + $0x4] sm:$0xf]
    %v70 = vld [vmem:[#allocation7 + $0x8] sm:$0xf]
    %v71 = vld [vmem:[#allocation7 + $0xc] sm:$0xf]
    %v72 = vld [vmem:[#allocation7 + $0x10] sm:$0xf]
    %v73 = vld [vmem:[#allocation7 + $0x14] sm:$0xf]
    %v74 = vld [vmem:[#allocation7 + $0x18] sm:$0xf]
    %v75 = vld [vmem:[#allocation7 + $0x1c] sm:$0xf]
    %v76 = vld [vmem:[#allocation7 + $0x20] sm:$0xf]
    %v77 = vld [vmem:[#allocation7 + $0x24] sm:$0xf]
    %v78 = vld [vmem:[#allocation7 + $0x28] sm:$0xf]
    %v79 = vld [vmem:[#allocation7 + $0x2c] sm:$0xf]
    %v80 = vld [vmem:[#allocation7 + $0x30] sm:$0xf]
    %v81 = vld [vmem:[#allocation7 + $0x34] sm:$0xf]
    %v82 = vld [vmem:[#allocation7 + $0x38] sm:$0xf]
    %v83 = vld [vmem:[#allocation7 + $0x3c] sm:$0xf]
    %v92 = vunpack.c.l.b16 %v60
    %v93 = vunpack.c.l.b16 %v61
    %v94 = vunpack.c.l.b16 %v62
    %v95 = vunpack.c.l.b16 %v63
    %v96 = vunpack.c.l.b16 %v64
    %v97 = vunpack.c.l.b16 %v65
    %v98 = vunpack.c.l.b16 %v66
    %v99 = vunpack.c.l.b16 %v67
    %v100 = vpack.c.b16 %v93, %v92
    %v101 = vpack.c.b16 %v95, %v94
    %v102 = vpack.c.b16 %v97, %v96
    %v103 = vpack.c.b16 %v99, %v98
    %v124 = vunpack.c.l.b16 %v68
    %v125 = vunpack.c.l.b16 %v69
    %v126 = vunpack.c.l.b16 %v70
    %v127 = vunpack.c.l.b16 %v71
    %v128 = vunpack.c.l.b16 %v72
    %v129 = vunpack.c.l.b16 %v73
    %v130 = vunpack.c.l.b16 %v74
    %v131 = vunpack.c.l.b16 %v75
    %v132 = vunpack.c.l.b16 %v76
    %v133 = vunpack.c.l.b16 %v77
    %v134 = vunpack.c.l.b16 %v78
    %v135 = vunpack.c.l.b16 %v79
    %v136 = vunpack.c.l.b16 %v80
    %v137 = vunpack.c.l.b16 %v81
    %v138 = vunpack.c.l.b16 %v82
    %v139 = vunpack.c.l.b16 %v83
    %v140 = vpack.c.b16 %v125, %v124
    %v141 = vpack.c.b16 %v127, %v126
    %v142 = vpack.c.b16 %v129, %v128
    %v143 = vpack.c.b16 %v131, %v130
    %v144 = vpack.c.b16 %v133, %v132
    %v145 = vpack.c.b16 %v135, %v134
    %v146 = vpack.c.b16 %v137, %v136
    %v147 = vpack.c.b16 %v139, %v138
    %156 = vmatprep.subr.bf16.mxu0 0
    %157 = vmatpush1.bf16.msra.mxu0 %v140
    %158 = vmatprep.subr.bf16.mxu0 0
    %159 = vmatpush1.bf16.msra.mxu0 %v141
    %160 = vmatprep.subr.bf16.mxu0 0
    %161 = vmatpush1.bf16.msra.mxu0 %v142
    %162 = vmatprep.subr.bf16.mxu0 0
    %163 = vmatpush1.bf16.msra.mxu0 %v143
    %164 = vmatprep.subr.bf16.mxu0 0
    %165 = vmatpush1.bf16.msra.mxu0 %v144
    %166 = vmatprep.subr.bf16.mxu0 0
    %167 = vmatpush1.bf16.msra.mxu0 %v145
    %168 = vmatprep.subr.bf16.mxu0 0
    %169 = vmatpush1.bf16.msra.mxu0 %v146
    %170 = vmatprep.subr.bf16.mxu0 0
    %171 = vmatpush1.bf16.msra.mxu0 %v147
    %172 = vmatprep.subr.bf16.mxu0 0
    %173 = vmatpush1.bf16.msra.mxu0 0
    %174 = vmatprep.subr.bf16.mxu0 0
    %175 = vmatpush1.bf16.msra.mxu0 0
    %176 = vmatprep.subr.bf16.mxu0 0
    %177 = vmatpush1.bf16.msra.mxu0 0
    %178 = vmatprep.subr.bf16.mxu0 0
    %179 = vmatpush1.bf16.msra.mxu0 0
    %180 = vmatprep.subr.bf16.mxu0 0
    %181 = vmatpush1.bf16.msra.mxu0 0
    %182 = vmatprep.subr.bf16.mxu0 0
    %183 = vmatpush1.bf16.msra.mxu0 0
    %184 = vmatprep.subr.bf16.mxu0 0
    %185 = vmatpush1.bf16.msra.mxu0 0
    %186 = vmatprep.subr.bf16.mxu0 0
    %187 = vmatpush1.bf16.msra.mxu0 0
    %188 = vmatprep.mubr.bf16.mxu0 0
    %189 = vmatmul.mubr.bf16.gmra.mrb[0].mxu0 %v100
    %v190 = vpop.f32.mrb[0].mxu0
    %v191 = vadd.f32 0.0, %v190
    %v192 = vpop.f32.mrb[0].mxu0
    %v193 = vpop.f32.mrb[0].mxu0
    %v194 = vadd.f32 0.0, %v193
    %v195 = vpop.f32.mrb[0].mxu0
    %196 = vmatprep.mubr.bf16.mxu0 0
    %197 = vmatmul.mubr.bf16.gmra.mrb[0].mxu0 %v101
    %v198 = vpop.f32.mrb[0].mxu0
    %v199 = vadd.f32 0.0, %v198
    %v200 = vpop.f32.mrb[0].mxu0
    %v201 = vpop.f32.mrb[0].mxu0
    %v202 = vadd.f32 0.0, %v201
    %v203 = vpop.f32.mrb[0].mxu0
    %204 = vmatprep.mubr.bf16.mxu0 0
    %205 = vmatmul.mubr.bf16.gmra.mrb[0].mxu0 %v102
    %v206 = vpop.f32.mrb[0].mxu0
    %v207 = vadd.f32 0.0, %v206
    %v208 = vpop.f32.mrb[0].mxu0
    %v209 = vpop.f32.mrb[0].mxu0
    %v210 = vadd.f32 0.0, %v209
    %v211 = vpop.f32.mrb[0].mxu0
    %212 = vmatprep.mubr.bf16.mxu0 0
    %213 = vmatmul.mubr.bf16.gmra.mrb[0].mxu0 %v103
    %v214 = vpop.f32.mrb[0].mxu0
    %v215 = vadd.f32 0.0, %v214
    %v216 = vpop.f32.mrb[0].mxu0
    %v217 = vpop.f32.mrb[0].mxu0
    %v218 = vadd.f32 0.0, %v217
    %v219 = vpop.f32.mrb[0].mxu0
    %220 = vdwg.mxu0
    %v221 = vld [vmem:[#allocation2] sm:$0xff]
    %v222 = vld [vmem:[#allocation2 + $0x8] sm:$0xff]
    %v223 = vld [vmem:[%s3] sm:$0x1]
    %v225 = vlaneseq
    %v226 = vshrl.u32 %v225, 7
    %v227 = vsub.s32 0, %v226
    %v228 = vrot.slane %v223, %v227
    %vm230 = vcmask 130048
    %v232 = vsel %vm230, %v221, 0
    %v235 = vsel %vm230, %v222, 0
    %237 = vmatprep.subr.mxu0 0.0
    %238 = vmatpush1.msra.mxu0 %v191
    %239 = vmatprep.subr.mxu0 0.0
    %240 = vmatpush1.msra.mxu0 %v194
    %241 = vmatprep.subr.mxu0 0.0
    %242 = vmatpush1.msra.mxu0 0.0
    %243 = vmatprep.subr.mxu0 0.0
    %244 = vmatpush1.msra.mxu0 0.0
    %245 = vmatprep.subr.mxu0 0.0
    %246 = vmatpush1.msra.mxu0 0.0
    %247 = vmatprep.subr.mxu0 0.0
    %248 = vmatpush1.msra.mxu0 0.0
    %249 = vmatprep.subr.mxu0 0.0
    %250 = vmatpush1.msra.mxu0 0.0
    %251 = vmatprep.subr.mxu0 0.0
    %252 = vmatpush1.msra.mxu0 0.0
    %253 = vmatprep.subr.mxu0 0.0
    %254 = vmatpush1.msra.mxu0 0.0
    %255 = vmatprep.subr.mxu0 0.0
    %256 = vmatpush1.msra.mxu0 0.0
    %257 = vmatprep.subr.mxu0 0.0
    %258 = vmatpush1.msra.mxu0 0.0
    %259 = vmatprep.subr.mxu0 0.0
    %260 = vmatpush1.msra.mxu0 0.0
    %261 = vmatprep.subr.mxu0 0.0
    %262 = vmatpush1.msra.mxu0 0.0
    %263 = vmatprep.subr.mxu0 0.0
    %264 = vmatpush1.msra.mxu0 0.0
    %265 = vmatprep.subr.mxu0 0.0
    %266 = vmatpush1.msra.mxu0 0.0
    %267 = vmatprep.subr.mxu0 0.0
    %268 = vmatpush1.msra.mxu0 0.0
    %269 = vmatprep.subr.mxu0 0.0
    %270 = vmatpush1.msra.mxu0 0.0
    %271 = vmatprep.subr.mxu0 0.0
    %272 = vmatpush1.msra.mxu0 0.0
    %273 = vmatprep.subr.mxu0 0.0
    %274 = vmatpush1.msra.mxu0 0.0
    %275 = vmatprep.subr.mxu0 0.0
    %276 = vmatpush1.msra.mxu0 0.0
    %277 = vmatprep.subr.mxu0 0.0
    %278 = vmatpush1.msra.mxu0 0.0
    %279 = vmatprep.subr.mxu0 0.0
    %280 = vmatpush1.msra.mxu0 0.0
    %281 = vmatprep.subr.mxu0 0.0
    %282 = vmatpush1.msra.mxu0 0.0
    %283 = vmatprep.subr.mxu0 0.0
    %284 = vmatpush1.msra.mxu0 0.0
    %285 = vmatprep.subr.mxu0 0.0
    %286 = vmatpush1.msra.mxu0 0.0
    %287 = vmatprep.subr.mxu0 0.0
    %288 = vmatpush1.msra.mxu0 0.0
    %289 = vmatprep.subr.mxu0 0.0
    %290 = vmatpush1.msra.mxu0 0.0
    %291 = vmatprep.subr.mxu0 0.0
    %292 = vmatpush1.msra.mxu0 0.0
    %293 = vmatprep.subr.mxu0 0.0
    %294 = vmatpush1.msra.mxu0 0.0
    %295 = vmatprep.subr.mxu0 0.0
    %296 = vmatpush1.msra.mxu0 0.0
    %297 = vmatprep.subr.mxu0 0.0
    %298 = vmatpush1.msra.mxu0 0.0
    %299 = vmatprep.subr.mxu0 0.0
    %300 = vmatpush1.msra.mxu0 0.0
    %301 = vmatprep.mubr.f32.mxu0 0.0
    %302 = vmatmul.mubr.f32.gmra.mrb[0].mxu0 %v232
    %v303 = vpop.f32.mrb[0].mxu0
    %v304 = vadd.f32 %v228, %v303
    %v305 = vpop.f32.mrb[0].mxu0
    %306 = vmatprep.mubr.f32.mxu0 0.0
    %307 = vmatmul.mubr.f32.gmra.mrb[0].mxu0 %v235
    %v308 = vpop.f32.mrb[0].mxu0
    %v309 = vadd.f32 %v228, %v308
    %v310 = vpop.f32.mrb[0].mxu0
    %311 = vdwg.mxu0
    %312 = vst [vmem:[#allocation8] sm:$0xff] %v304
    %313 = vst [vmem:[#allocation8 + $0x8] sm:$0xff] %v309
    %314 = vmatprep.subr.mxu0 0.0
    %315 = vmatpush1.msra.mxu0 %v199
    %316 = vmatprep.subr.mxu0 0.0
    %317 = vmatpush1.msra.mxu0 %v202
    %318 = vmatprep.subr.mxu0 0.0
    %319 = vmatpush1.msra.mxu0 0.0
    %320 = vmatprep.subr.mxu0 0.0
    %321 = vmatpush1.msra.mxu0 0.0
    %322 = vmatprep.subr.mxu0 0.0
    %323 = vmatpush1.msra.mxu0 0.0
    %324 = vmatprep.subr.mxu0 0.0
    %325 = vmatpush1.msra.mxu0 0.0
    %326 = vmatprep.subr.mxu0 0.0
    %327 = vmatpush1.msra.mxu0 0.0
    %328 = vmatprep.subr.mxu0 0.0
    %329 = vmatpush1.msra.mxu0 0.0
    %330 = vmatprep.subr.mxu0 0.0
    %331 = vmatpush1.msra.mxu0 0.0
    %332 = vmatprep.subr.mxu0 0.0
    %333 = vmatpush1.msra.mxu0 0.0
    %334 = vmatprep.subr.mxu0 0.0
    %335 = vmatpush1.msra.mxu0 0.0
    %336 = vmatprep.subr.mxu0 0.0
    %337 = vmatpush1.msra.mxu0 0.0
    %338 = vmatprep.subr.mxu0 0.0
    %339 = vmatpush1.msra.mxu0 0.0
    %340 = vmatprep.subr.mxu0 0.0
    %341 = vmatpush1.msra.mxu0 0.0
    %342 = vmatprep.subr.mxu0 0.0
    %343 = vmatpush1.msra.mxu0 0.0
    %344 = vmatprep.subr.mxu0 0.0
    %345 = vmatpush1.msra.mxu0 0.0
    %346 = vmatprep.subr.mxu0 0.0
    %347 = vmatpush1.msra.mxu0 0.0
    %348 = vmatprep.subr.mxu0 0.0
    %349 = vmatpush1.msra.mxu0 0.0
    %350 = vmatprep.subr.mxu0 0.0
    %351 = vmatpush1.msra.mxu0 0.0
    %352 = vmatprep.subr.mxu0 0.0
    %353 = vmatpush1.msra.mxu0 0.0
    %354 = vmatprep.subr.mxu0 0.0
    %355 = vmatpush1.msra.mxu0 0.0
    %356 = vmatprep.subr.mxu0 0.0
    %357 = vmatpush1.msra.mxu0 0.0
    %358 = vmatprep.subr.mxu0 0.0
    %359 = vmatpush1.msra.mxu0 0.0
    %360 = vmatprep.subr.mxu0 0.0
    %361 = vmatpush1.msra.mxu0 0.0
    %362 = vmatprep.subr.mxu0 0.0
    %363 = vmatpush1.msra.mxu0 0.0
    %364 = vmatprep.subr.mxu0 0.0
    %365 = vmatpush1.msra.mxu0 0.0
    %366 = vmatprep.subr.mxu0 0.0
    %367 = vmatpush1.msra.mxu0 0.0
    %368 = vmatprep.subr.mxu0 0.0
    %369 = vmatpush1.msra.mxu0 0.0
    %370 = vmatprep.subr.mxu0 0.0
    %371 = vmatpush1.msra.mxu0 0.0
    %372 = vmatprep.subr.mxu0 0.0
    %373 = vmatpush1.msra.mxu0 0.0
    %374 = vmatprep.subr.mxu0 0.0
    %375 = vmatpush1.msra.mxu0 0.0
    %376 = vmatprep.subr.mxu0 0.0
    %377 = vmatpush1.msra.mxu0 0.0
    %378 = vmatprep.mubr.f32.mxu0 0.0
    %379 = vmatmul.mubr.f32.gmra.mrb[0].mxu0 %v232
    %v380 = vpop.f32.mrb[0].mxu0
    %v381 = vadd.f32 %v228, %v380
    %v382 = vpop.f32.mrb[0].mxu0
    %383 = vmatprep.mubr.f32.mxu0 0.0
    %384 = vmatmul.mubr.f32.gmra.mrb[0].mxu0 %v235
    %v385 = vpop.f32.mrb[0].mxu0
    %v386 = vadd.f32 %v228, %v385
    %v387 = vpop.f32.mrb[0].mxu0
    %388 = vdwg.mxu0
    %389 = vst [vmem:[#allocation8 + $0x10] sm:$0xff] %v381
    %390 = vst [vmem:[#allocation8 + $0x18] sm:$0xff] %v386
    %391 = vmatprep.subr.mxu0 0.0
    %392 = vmatpush1.msra.mxu0 %v207
    %393 = vmatprep.subr.mxu0 0.0
    %394 = vmatpush1.msra.mxu0 %v210
    %395 = vmatprep.subr.mxu0 0.0
    %396 = vmatpush1.msra.mxu0 0.0
    %397 = vmatprep.subr.mxu0 0.0
    %398 = vmatpush1.msra.mxu0 0.0
    %399 = vmatprep.subr.mxu0 0.0
    %400 = vmatpush1.msra.mxu0 0.0
    %401 = vmatprep.subr.mxu0 0.0
    %402 = vmatpush1.msra.mxu0 0.0
    %403 = vmatprep.subr.mxu0 0.0
    %404 = vmatpush1.msra.mxu0 0.0
    %405 = vmatprep.subr.mxu0 0.0
    %406 = vmatpush1.msra.mxu0 0.0
    %407 = vmatprep.subr.mxu0 0.0
    %408 = vmatpush1.msra.mxu0 0.0
    %409 = vmatprep.subr.mxu0 0.0
    %410 = vmatpush1.msra.mxu0 0.0
    %411 = vmatprep.subr.mxu0 0.0
    %412 = vmatpush1.msra.mxu0 0.0
    %413 = vmatprep.subr.mxu0 0.0
    %414 = vmatpush1.msra.mxu0 0.0
    %415 = vmatprep.subr.mxu0 0.0
    %416 = vmatpush1.msra.mxu0 0.0
    %417 = vmatprep.subr.mxu0 0.0
    %418 = vmatpush1.msra.mxu0 0.0
    %419 = vmatprep.subr.mxu0 0.0
    %420 = vmatpush1.msra.mxu0 0.0
    %421 = vmatprep.subr.mxu0 0.0
    %422 = vmatpush1.msra.mxu0 0.0
    %423 = vmatprep.subr.mxu0 0.0
    %424 = vmatpush1.msra.mxu0 0.0
    %425 = vmatprep.subr.mxu0 0.0
    %426 = vmatpush1.msra.mxu0 0.0
    %427 = vmatprep.subr.mxu0 0.0
    %428 = vmatpush1.msra.mxu0 0.0
    %429 = vmatprep.subr.mxu0 0.0
    %430 = vmatpush1.msra.mxu0 0.0
    %431 = vmatprep.subr.mxu0 0.0
    %432 = vmatpush1.msra.mxu0 0.0
    %433 = vmatprep.subr.mxu0 0.0
    %434 = vmatpush1.msra.mxu0 0.0
    %435 = vmatprep.subr.mxu0 0.0
    %436 = vmatpush1.msra.mxu0 0.0
    %437 = vmatprep.subr.mxu0 0.0
    %438 = vmatpush1.msra.mxu0 0.0
    %439 = vmatprep.subr.mxu0 0.0
    %440 = vmatpush1.msra.mxu0 0.0
    %441 = vmatprep.subr.mxu0 0.0
    %442 = vmatpush1.msra.mxu0 0.0
    %443 = vmatprep.subr.mxu0 0.0
    %444 = vmatpush1.msra.mxu0 0.0
    %445 = vmatprep.subr.mxu0 0.0
    %446 = vmatpush1.msra.mxu0 0.0
    %447 = vmatprep.subr.mxu0 0.0
    %448 = vmatpush1.msra.mxu0 0.0
    %449 = vmatprep.subr.mxu0 0.0
    %450 = vmatpush1.msra.mxu0 0.0
    %451 = vmatprep.subr.mxu0 0.0
    %452 = vmatpush1.msra.mxu0 0.0
    %453 = vmatprep.subr.mxu0 0.0
    %454 = vmatpush1.msra.mxu0 0.0
    %455 = vmatprep.mubr.f32.mxu0 0.0
    %456 = vmatmul.mubr.f32.gmra.mrb[0].mxu0 %v232
    %v457 = vpop.f32.mrb[0].mxu0
    %v458 = vadd.f32 %v228, %v457
    %v459 = vpop.f32.mrb[0].mxu0
    %460 = vmatprep.mubr.f32.mxu0 0.0
    %461 = vmatmul.mubr.f32.gmra.mrb[0].mxu0 %v235
    %v462 = vpop.f32.mrb[0].mxu0
    %v463 = vadd.f32 %v228, %v462
    %v464 = vpop.f32.mrb[0].mxu0
    %465 = vdwg.mxu0
    %466 = vst [vmem:[#allocation8 + $0x20] sm:$0xff] %v458
    %467 = vst [vmem:[#allocation8 + $0x28] sm:$0xff] %v463
    %468 = vmatprep.subr.mxu0 0.0
    %469 = vmatpush1.msra.mxu0 %v215
    %470 = vmatprep.subr.mxu0 0.0
    %471 = vmatpush1.msra.mxu0 %v218
    %472 = vmatprep.subr.mxu0 0.0
    %473 = vmatpush1.msra.mxu0 0.0
    %474 = vmatprep.subr.mxu0 0.0
    %475 = vmatpush1.msra.mxu0 0.0
    %476 = vmatprep.subr.mxu0 0.0
    %477 = vmatpush1.msra.mxu0 0.0
    %478 = vmatprep.subr.mxu0 0.0
    %479 = vmatpush1.msra.mxu0 0.0
    %480 = vmatprep.subr.mxu0 0.0
    %481 = vmatpush1.msra.mxu0 0.0
    %482 = vmatprep.subr.mxu0 0.0
    %483 = vmatpush1.msra.mxu0 0.0
    %484 = vmatprep.subr.mxu0 0.0
    %485 = vmatpush1.msra.mxu0 0.0
    %486 = vmatprep.subr.mxu0 0.0
    %487 = vmatpush1.msra.mxu0 0.0
    %488 = vmatprep.subr.mxu0 0.0
    %489 = vmatpush1.msra.mxu0 0.0
    %490 = vmatprep.subr.mxu0 0.0
    %491 = vmatpush1.msra.mxu0 0.0
    %492 = vmatprep.subr.mxu0 0.0
    %493 = vmatpush1.msra.mxu0 0.0
    %494 = vmatprep.subr.mxu0 0.0
    %495 = vmatpush1.msra.mxu0 0.0
    %496 = vmatprep.subr.mxu0 0.0
    %497 = vmatpush1.msra.mxu0 0.0
    %498 = vmatprep.subr.mxu0 0.0
    %499 = vmatpush1.msra.mxu0 0.0
    %500 = vmatprep.subr.mxu0 0.0
    %501 = vmatpush1.msra.mxu0 0.0
    %502 = vmatprep.subr.mxu0 0.0
    %503 = vmatpush1.msra.mxu0 0.0
    %504 = vmatprep.subr.mxu0 0.0
    %505 = vmatpush1.msra.mxu0 0.0
    %506 = vmatprep.subr.mxu0 0.0
    %507 = vmatpush1.msra.mxu0 0.0
    %508 = vmatprep.subr.mxu0 0.0
    %509 = vmatpush1.msra.mxu0 0.0
    %510 = vmatprep.subr.mxu0 0.0
    %511 = vmatpush1.msra.mxu0 0.0
    %512 = vmatprep.subr.mxu0 0.0
    %513 = vmatpush1.msra.mxu0 0.0
    %514 = vmatprep.subr.mxu0 0.0
    %515 = vmatpush1.msra.mxu0 0.0
    %516 = vmatprep.subr.mxu0 0.0
    %517 = vmatpush1.msra.mxu0 0.0
    %518 = vmatprep.subr.mxu0 0.0
    %519 = vmatpush1.msra.mxu0 0.0
    %520 = vmatprep.subr.mxu0 0.0
    %521 = vmatpush1.msra.mxu0 0.0
    %522 = vmatprep.subr.mxu0 0.0
    %523 = vmatpush1.msra.mxu0 0.0
    %524 = vmatprep.subr.mxu0 0.0
    %525 = vmatpush1.msra.mxu0 0.0
    %526 = vmatprep.subr.mxu0 0.0
    %527 = vmatpush1.msra.mxu0 0.0
    %528 = vmatprep.subr.mxu0 0.0
    %529 = vmatpush1.msra.mxu0 0.0
    %530 = vmatprep.subr.mxu0 0.0
    %531 = vmatpush1.msra.mxu0 0.0
    %532 = vmatprep.mubr.f32.mxu0 0.0
    %533 = vmatmul.mubr.f32.gmra.mrb[0].mxu0 %v232
    %v534 = vpop.f32.mrb[0].mxu0
    %v535 = vadd.f32 %v228, %v534
    %v536 = vpop.f32.mrb[0].mxu0
    %537 = vmatprep.mubr.f32.mxu0 0.0
    %538 = vmatmul.mubr.f32.gmra.mrb[0].mxu0 %v235
    %v539 = vpop.f32.mrb[0].mxu0
    %v540 = vadd.f32 %v228, %v539
    %v541 = vpop.f32.mrb[0].mxu0
    %542 = vdwg.mxu0
    %543 = vst [vmem:[#allocation8 + $0x30] sm:$0xff] %v535
    %544 = vst [vmem:[#allocation8 + $0x38] sm:$0xff] %v540
    // Predicated region
    $region30: #{tpu_custom_call.1} parent=1 // pred_check
      _
    $region31: #{tpu_custom_call.1} parent=1 // pred_check_branch
      %546 = sbr.rel (0) target = $region33
    $region32: #{tpu_custom_call.1} parent=1 // pred_region
      %s548 = ssub.s32 1024, 1024
      %549 = vsyncadd [#allocation4], %s548
      %s550 = sshll.u32 [#allocation8], 4
      %s551 = int_to_ptr.vmem [resolvable:$true] %s550
      %556 = dma.vmem_to_hbm [thread:$0]  %s551, 1024, %s4, [#allocation4], 128, 128, 8
    $region33: #{tpu_custom_call.1} parent=1 // pred_fallthru
      _
    // Predicated region
    $region34: #{tpu_custom_call.1} parent=1 // pred_check
      _
    $region35: #{tpu_custom_call.1} parent=1 // pred_check_branch
      %558 = sbr.rel (0) target = $region37
    $region36: #{tpu_custom_call.1} parent=1 // pred_region
      %559 = dma.done [#allocation4], 1024
    $region37: #{tpu_custom_call.1} parent=1 // pred_fallthru
      _
    %560 = vsyncpa [#allocation3], 1
    %561 = vsyncpa [#allocation6], 1
    %562 = vsyncpa [#allocation4], 1

</llo_original>
